<compile_context>
chip_gen: v5e
topology: v5e:2x2
jax: 0.10.0
libtpu: 0.0.40
codegen_flags: <defaults>
</compile_context>

<pallas_src>
import functools

import jax
import jax.numpy as jnp
from jax.experimental import pallas as pl
from jax.experimental.pallas import tpu as pltpu

_EPS = 1e-6          # torch pairwise_distance default eps (added to the difference)
_ACC_THRESH = 0.6
_LANE = 128


def _ceil_to(x, m):
    return -(-x // m) * m


def _sublane(dtype):
    # Sublane packing: 8 rows for 4-byte dtypes, 16 for 2-byte, 32 for 1-byte.
    return max(8, 32 // jnp.dtype(dtype).itemsize)


def _physical_block_bytes(rows, cols, dtype):
    """VMEM bytes actually occupied by a (rows, cols) block of `dtype`."""
    item = jnp.dtype(dtype).itemsize
    return _ceil_to(rows, _sublane(dtype)) * _ceil_to(cols, _LANE) * item


def _vmem_budget_bytes():
    """Budget for the double-buffered input footprint, per TensorCore."""
    try:
        cap = pltpu.get_tpu_info().vmem_capacity_bytes
    except Exception:  # off-TPU / older API — assume the smallest (v7x: 64 MiB/TC)
        cap = 64 << 20
    return min(cap // 3, 24 << 20)


def _choose_block_rows(batch, feat, z_dtype, label_dtype, budget):
    # Per-row physical bytes for one pipeline-buffer set: two z blocks (feat
    # lane-padded to 128) + one (rows, 1) label block (also padded to 128
    # lanes).  Default BlockSpec pipelining double-buffers everything (x2).
    z_row = _ceil_to(feat, _LANE) * jnp.dtype(z_dtype).itemsize
    label_row = _LANE * jnp.dtype(label_dtype).itemsize
    per_row = 2 * (2 * z_row + label_row)
    rows = budget // per_row
    rows = max(_LANE, (rows // _LANE) * _LANE)   # multiple of 128 covers all sublane packs
    if rows >= batch:
        return batch                             # single full-batch block (fast path)
    return rows


def _contrastive_kernel(z1_ref, z2_ref, label_ref, loss_ref, correct_ref, *,
                        margin, batch, block_rows, n_tiles, needs_mask):
    # Native-dtype loads, f32 compute.
    z1 = z1_ref[...].astype(jnp.float32)                        # (TB, D)
    z2 = z2_ref[...].astype(jnp.float32)
    label = label_ref[...].astype(jnp.float32)                  # (TB, 1), values {0., 1.}

    # Pairwise L2 distance (torch adds eps to the difference before the norm).
    diff = z1 - z2 + _EPS
    sq_dist = jnp.sum(diff * diff, axis=-1, keepdims=True)      # (TB, 1)
    dist = jnp.sqrt(sq_dist)                                    # hinge + accuracy need it

    hinge = jnp.maximum(margin - dist, 0.0)
    per_row_loss = (1.0 - label) * sq_dist + label * (hinge * hinge)
    pred = (dist > _ACC_THRESH).astype(jnp.float32)
    per_row_correct = (pred == label).astype(jnp.float32)

    if needs_mask:
        # Partial last tile: mask padded rows with a select so garbage/NaN from
        # the edge block cannot leak into the sums.
        step = pl.program_id(0)
        rows = step * block_rows + jax.lax.broadcasted_iota(
            jnp.int32, (block_rows, 1), 0)
        valid = rows < batch
        per_row_loss = jnp.where(valid, per_row_loss, 0.0)
        per_row_correct = jnp.where(valid, per_row_correct, 0.0)

    loss_part = jnp.sum(per_row_loss, axis=0, keepdims=True)     # (1, 1)
    corr_part = jnp.sum(per_row_correct, axis=0, keepdims=True)  # (1, 1)

    if n_tiles == 1:
        # Fast path: single block -> no accumulator init, direct store.
        loss_ref[...] = loss_part
        correct_ref[...] = corr_part
    else:
        step = pl.program_id(0)

        @pl.when(step == 0)
        def _init():
            loss_ref[...] = jnp.zeros_like(loss_ref)
            correct_ref[...] = jnp.zeros_like(correct_ref)

        loss_ref[...] += loss_part
        correct_ref[...] += corr_part


def contrastive_loss(z1, z2, label, margin, *, block_rows=None):
    """Returns (loss, acc) scalars matching the PyTorch ContrastiveLoss forward."""
    assert z1.shape == z2.shape and z1.ndim == 2
    batch, feat = z1.shape
    assert label.shape == (batch, 1)

    # z1/z2 stay in their native dtype (upcast happens in-kernel).  Only a
    # non-float label (tiny tensor) is cast so the {0,1} arithmetic is valid.
    if not jnp.issubdtype(label.dtype, jnp.floating):
        label = label.astype(jnp.float32)

    budget = _vmem_budget_bytes()
    sub = _sublane(z1.dtype)

    if block_rows is None:
        block_rows = _choose_block_rows(batch, feat, z1.dtype, label.dtype, budget)
    elif block_rows >= batch:
        block_rows = batch
    else:
        block_rows = max(sub, (block_rows // sub) * sub)   # keep sublane-divisible

    n_tiles = pl.cdiv(batch, block_rows)
    needs_mask = (batch % block_rows) != 0
    grid = (n_tiles,)

    # Physical (padded) double-buffered input footprint + headroom.
    footprint = 2 * (2 * _physical_block_bytes(block_rows, feat, z1.dtype)
                     + _physical_block_bytes(block_rows, 1, label.dtype))
    vmem_limit = int(footprint + (8 << 20))

    kernel = functools.partial(
        _contrastive_kernel,
        margin=float(margin),
        batch=batch,
        block_rows=block_rows,
        n_tiles=int(n_tiles),
        needs_mask=bool(needs_mask),
    )

    in_map = lambda i: (i, 0)
    out_shape = jax.ShapeDtypeStruct((1, 1), jnp.float32)
    out_spec = pl.BlockSpec((1, 1), lambda i: (0, 0))   # resident accumulator

    loss_sum, correct_sum = pl.pallas_call(
        kernel,
        grid=grid,
        out_shape=(out_shape, out_shape),
        in_specs=[pl.BlockSpec((block_rows, feat), in_map),
                  pl.BlockSpec((block_rows, feat), in_map),
                  pl.BlockSpec((block_rows, 1), in_map)],
        out_specs=(out_spec, out_spec),
        compiler_params=pltpu.CompilerParams(
            dimension_semantics=("arbitrary",),
            vmem_limit_bytes=vmem_limit,
        ),
    )(z1, z2, label)

    inv_b = 1.0 / batch
    loss = loss_sum[0, 0] * inv_b
    acc = correct_sum[0, 0] * inv_b
    return loss, acc


def _reference(z1, z2, label, margin):
    z1 = z1.astype(jnp.float32)
    z2 = z2.astype(jnp.float32)
    label = label.astype(jnp.float32)
    diff = z1 - z2 + _EPS
    dist = jnp.sqrt(jnp.sum(diff * diff, axis=-1, keepdims=True))
    loss = jnp.mean((1.0 - label) * dist ** 2
                    + label * jnp.maximum(margin - dist, 0.0) ** 2)
    acc = jnp.mean(((dist > _ACC_THRESH).astype(jnp.float32) == label).astype(jnp.float32))
    return loss, acc


if __name__ == "__main__":
    margin = 1.0

    # 1) Small siamese-embedding batch (single-block fast path), f32.
    B, D = 8, 32
    k1, k2, k3 = jax.random.split(jax.random.PRNGKey(0), 3)
    z1 = jax.random.normal(k1, (B, D), dtype=jnp.float32)
    z2 = jax.random.normal(k2, (B, D), dtype=jnp.float32)
    label = jax.random.bernoulli(k3, 0.5, (B, 1)).astype(jnp.float32)

    loss, acc = contrastive_loss(z1, z2, label, margin)
    jax.block_until_ready((loss, acc))
    ref_loss, ref_acc = _reference(z1, z2, label, margin)
    assert jnp.allclose(loss, ref_loss, rtol=1e-5, atol=1e-6), (loss, ref_loss)
    assert jnp.allclose(acc, ref_acc, rtol=1e-5, atol=1e-6), (acc, ref_acc)

    # 2) Tiled / masked multi-step path (B not a multiple of the tile size), f32.
    B2, D2 = 50, 32
    k4, k5, k6 = jax.random.split(jax.random.PRNGKey(1), 3)
    z1b = jax.random.normal(k4, (B2, D2), dtype=jnp.float32)
    z2b = jax.random.normal(k5, (B2, D2), dtype=jnp.float32)
    labelb = jax.random.bernoulli(k6, 0.5, (B2, 1)).astype(jnp.float32)

    loss2, acc2 = contrastive_loss(z1b, z2b, labelb, margin, block_rows=16)
    jax.block_until_ready((loss2, acc2))
    ref_loss2, ref_acc2 = _reference(z1b, z2b, labelb, margin)
    assert jnp.allclose(loss2, ref_loss2, rtol=1e-5, atol=1e-6), (loss2, ref_loss2)
    assert jnp.allclose(acc2, ref_acc2, rtol=1e-5, atol=1e-6), (acc2, ref_acc2)

    # 3) Native bf16 embeddings (no wrapper cast; in-kernel upcast to f32).
    B3, D3 = 16, 64
    k7, k8, k9 = jax.random.split(jax.random.PRNGKey(2), 3)
    z1c = jax.random.normal(k7, (B3, D3), dtype=jnp.bfloat16)
    z2c = jax.random.normal(k8, (B3, D3), dtype=jnp.bfloat16)
    labelc = jax.random.bernoulli(k9, 0.5, (B3, 1)).astype(jnp.float32)

    loss3, acc3 = contrastive_loss(z1c, z2c, labelc, margin)
    jax.block_until_ready((loss3, acc3))
    ref_loss3, ref_acc3 = _reference(z1c, z2c, labelc, margin)
    assert jnp.allclose(loss3, ref_loss3, rtol=1e-4, atol=1e-5), (loss3, ref_loss3)
    assert jnp.allclose(acc3, ref_acc3, rtol=1e-4, atol=1e-5), (acc3, ref_acc3)

    print("KERNEL_OK")
</pallas_src>

<mosaic_0001>
module attributes {stable_mosaic.version = 11 : i64} {
  func.func @_contrastive_kernel(%arg0: i32, %arg1: memref<8x32xf32, #tpu.memory_space<vmem>>, %arg2: memref<8x32xf32, #tpu.memory_space<vmem>>, %arg3: memref<8x1xf32, #tpu.memory_space<vmem>>, %arg4: memref<1x1xf32, #tpu.memory_space<vmem>>, %arg5: memref<1x1xf32, #tpu.memory_space<vmem>>) attributes {dimension_semantics = [#tpu.dimension_semantics<arbitrary>], iteration_bounds = array<i64: 1>, scalar_prefetch = 0 : i64, scratch_operands = 0 : i64, tpu.core_type = #tpu.core_type<tc>, window_params = [{transform_indices = @transform_0, window_bounds = array<i64: 8, 32>}, {transform_indices = @transform_1, window_bounds = array<i64: 8, 32>}, {transform_indices = @transform_2, window_bounds = array<i64: 8, 1>}, {pipeline_mode = #tpu.pipeline_mode<synchronous>, transform_indices = @transform_3, window_bounds = array<i64: 1, 1>}, {pipeline_mode = #tpu.pipeline_mode<synchronous>, transform_indices = @transform_4, window_bounds = array<i64: 1, 1>}]} {
    %c0 = arith.constant 0 : index
    %c0_0 = arith.constant 0 : index
    %0 = vector.load %arg1[%c0, %c0_0] : memref<8x32xf32, #tpu.memory_space<vmem>>, vector<8x32xf32>
    %c0_1 = arith.constant 0 : index
    %c0_2 = arith.constant 0 : index
    %1 = vector.load %arg2[%c0_1, %c0_2] : memref<8x32xf32, #tpu.memory_space<vmem>>, vector<8x32xf32>
    %c0_3 = arith.constant 0 : index
    %c0_4 = arith.constant 0 : index
    %2 = vector.load %arg3[%c0_3, %c0_4] : memref<8x1xf32, #tpu.memory_space<vmem>>, vector<8x1xf32>
    %3 = arith.subf %0, %1 : vector<8x32xf32>
    %cst = arith.constant 9.99999997E-7 : f32
    %4 = vector.broadcast %cst : f32 to vector<8x32xf32>
    %5 = arith.addf %3, %4 : vector<8x32xf32>
    %6 = arith.mulf %5, %5 : vector<8x32xf32>
    %cst_5 = arith.constant dense<0.000000e+00> : vector<8xf32>
    %7 = vector.multi_reduction <add>, %6, %cst_5 [1] : vector<8x32xf32> to vector<8xf32>
    %8 = vector.shape_cast %7 : vector<8xf32> to vector<8x1xf32>
    %9 = math.sqrt %8 : vector<8x1xf32>
    %cst_6 = arith.constant 1.000000e+00 : f32
    %10 = vector.broadcast %cst_6 : f32 to vector<8x1xf32>
    %11 = arith.subf %10, %9 : vector<8x1xf32>
    %cst_7 = arith.constant 0.000000e+00 : f32
    %12 = vector.broadcast %cst_7 : f32 to vector<8x1xf32>
    %13 = arith.maximumf %11, %12 : vector<8x1xf32>
    %cst_8 = arith.constant 1.000000e+00 : f32
    %14 = vector.broadcast %cst_8 : f32 to vector<8x1xf32>
    %15 = arith.subf %14, %2 : vector<8x1xf32>
    %16 = arith.mulf %15, %8 : vector<8x1xf32>
    %17 = arith.mulf %13, %13 : vector<8x1xf32>
    %18 = arith.mulf %2, %17 : vector<8x1xf32>
    %19 = arith.addf %16, %18 : vector<8x1xf32>
    %cst_9 = arith.constant 6.000000e-01 : f32
    %20 = vector.broadcast %cst_9 : f32 to vector<8x1xf32>
    %21 = arith.cmpf ogt, %9, %20 : vector<8x1xf32>
    %22 = arith.extui %21 : vector<8x1xi1> to vector<8x1xi32>
    %23 = arith.sitofp %22 : vector<8x1xi32> to vector<8x1xf32>
    %24 = arith.cmpf oeq, %23, %2 : vector<8x1xf32>
    %25 = arith.extui %24 : vector<8x1xi1> to vector<8x1xi32>
    %26 = arith.sitofp %25 : vector<8x1xi32> to vector<8x1xf32>
    %cst_10 = arith.constant dense<0.000000e+00> : vector<1xf32>
    %27 = vector.multi_reduction <add>, %19, %cst_10 [0] : vector<8x1xf32> to vector<1xf32>
    %28 = vector.shape_cast %27 : vector<1xf32> to vector<1x1xf32>
    %cst_11 = arith.constant dense<0.000000e+00> : vector<1xf32>
    %29 = vector.multi_reduction <add>, %26, %cst_11 [0] : vector<8x1xf32> to vector<1xf32>
    %30 = vector.shape_cast %29 : vector<1xf32> to vector<1x1xf32>
    %c0_12 = arith.constant 0 : index
    %c0_13 = arith.constant 0 : index
    %31 = vector.load %arg4[%c0_12, %c0_13] : memref<1x1xf32, #tpu.memory_space<vmem>>, vector<1x1xf32>
    tpu.vector_store %arg4[%c0_12, %c0_13], %28 {strides = array<i32>} : memref<1x1xf32, #tpu.memory_space<vmem>>, vector<1x1xf32>,
    %c0_14 = arith.constant 0 : index
    %c0_15 = arith.constant 0 : index
    %32 = vector.load %arg5[%c0_14, %c0_15] : memref<1x1xf32, #tpu.memory_space<vmem>>, vector<1x1xf32>
    tpu.vector_store %arg5[%c0_14, %c0_15], %30 {strides = array<i32>} : memref<1x1xf32, #tpu.memory_space<vmem>>, vector<1x1xf32>,
    return
  }
  func.func @transform_0(%arg0: i32) -> (i32, i32) {
    %c0_i32 = arith.constant 0 : i32
    %c0_i32_0 = arith.constant 0 : i32
    return %arg0, %c0_i32 : i32, i32
  }
  func.func @transform_1(%arg0: i32) -> (i32, i32) {
    %c0_i32 = arith.constant 0 : i32
    %c0_i32_0 = arith.constant 0 : i32
    return %arg0, %c0_i32 : i32, i32
  }
  func.func @transform_2(%arg0: i32) -> (i32, i32) {
    %c0_i32 = arith.constant 0 : i32
    %c0_i32_0 = arith.constant 0 : i32
    return %arg0, %c0_i32 : i32, i32
  }
  func.func @transform_3(%arg0: i32) -> (i32, i32) {
    %c0_i32 = arith.constant 0 : i32
    %c0_i32_0 = arith.constant 0 : i32
    %c0_i32_1 = arith.constant 0 : i32
    return %c0_i32, %c0_i32_0 : i32, i32
  }
  func.func @transform_4(%arg0: i32) -> (i32, i32) {
    %c0_i32 = arith.constant 0 : i32
    %c0_i32_0 = arith.constant 0 : i32
    %c0_i32_1 = arith.constant 0 : i32
    return %c0_i32, %c0_i32_0 : i32, i32
  }
}

</mosaic_0001>

<llo_original>
// kernel: tpu_custom_call.1
$region0: #{tpu_custom_call.1}
  #allocation0 [shape = 'u32[]', space=smem, size = 0x4, offset = 0x4, fixed_abs, tag = 'smem constant byte address 0x4 - core index']
  #allocation1 [shape = 'u32[72,128]{1,0:T(1,128)}', space=vmem, size = 0x9000, scoped, tag = 'internal scratch']
  %s0 = inlined_call_operand.vmem [shape: f32[8,32], index: 0, kind: input, shape index: {}]
  %s1 = inlined_call_operand.hbm [shape: f32[8,32], index: 1, kind: input, shape index: {}]
  %s2 = inlined_call_operand.vmem [shape: f32[8,1], index: 2, kind: input, shape index: {}]
  %s3 = inlined_call_operand.hbm [shape: f32[1,1], index: 3, kind: output, shape index: {0}]
  %s4 = inlined_call_operand.hbm [shape: f32[1,1], index: 4, kind: output, shape index: {1}]
  %5 = xla_tuple %s3, %s4
  %s6 = sld [smem:[#allocation0]]
  $region34: #{tpu_custom_call.1} parent=0
    _
  %s8 = ssub.s32 1, %s6
  %s9 = scalar_select 0, %s8, %s6
  $region1: #{tpu_custom_call.1} parent=0
    #allocation2 [shape = 'u8[4096]{0}', space=vmem, size = 0x1000, scoped, tag = 'input window, operand 1, single buffered']
    #allocation3 [shape = 's32[1]{0}', space=sflag, size = 0x4, scoped, tag = 'scoped memory for tpu_custom_call.1']
    #allocation4 [shape = 's32[1]{0}', space=sflag, size = 0x4, scoped, tag = 'scoped memory for tpu_custom_call.1']
    #allocation5 [shape = 'u8[512]{0}', space=vmem, size = 0x400, scoped, tag = 'output window, operand 0, single buffered']
    #allocation6 [shape = 'u8[512]{0}', space=vmem, size = 0x400, scoped, tag = 'output window, operand 1, single buffered']
    #allocation7 [shape = 's32[1]{0}', space=sflag, size = 0x4, scoped, tag = 'scoped memory for tpu_custom_call.1']
    %10 = vsyncpa [#allocation3], 0
    %11 = vsyncpa [#allocation4], 0
    %12 = vsyncpa [#allocation7], 0
    // Predicated region
    $region2: #{tpu_custom_call.1} parent=1 // pred_check
      _
    $region3: #{tpu_custom_call.1} parent=1 // pred_check_branch
      %14 = sbr.rel (0) target = $region5
    $region4: #{tpu_custom_call.1} parent=1 // pred_region
      _
    $region5: #{tpu_custom_call.1} parent=1 // pred_fallthru
      _
    // Predicated region
    $region6: #{tpu_custom_call.1} parent=1 // pred_check
      _
    $region7: #{tpu_custom_call.1} parent=1 // pred_check_branch
      %16 = sbr.rel (0) target = $region9
    $region8: #{tpu_custom_call.1} parent=1 // pred_region
      %18 = vsyncadd [#allocation3], 0
      %s20 = sshll.u32 %s1, 4
      %s21 = int_to_ptr.hbm [resolvable:$true] %s20
      %s22 = sshll.u32 [#allocation2], 4
      %s23 = int_to_ptr.vmem [resolvable:$true] %s22
      %25 = dma.hbm_to_vmem [thread:$0]  %s21, 128, %s23, [#allocation3]
    $region9: #{tpu_custom_call.1} parent=1 // pred_fallthru
      _
    // Predicated region
    $region10: #{tpu_custom_call.1} parent=1 // pred_check
      _
    $region11: #{tpu_custom_call.1} parent=1 // pred_check_branch
      %27 = sbr.rel (0) target = $region13
    $region12: #{tpu_custom_call.1} parent=1 // pred_region
      _
    $region13: #{tpu_custom_call.1} parent=1 // pred_fallthru
      _
    // Predicated region
    $region14: #{tpu_custom_call.1} parent=1 // pred_check
      _
    $region15: #{tpu_custom_call.1} parent=1 // pred_check_branch
      %29 = sbr.rel (0) target = $region17
    $region16: #{tpu_custom_call.1} parent=1 // pred_region
      %31 = dma.done [#allocation3], 128
    $region17: #{tpu_custom_call.1} parent=1 // pred_fallthru
      _
    %v32 = vld [vmem:[%s0] sm:$0xff]
    %v33 = vld [vmem:[#allocation2] sm:$0xff]
    %v34 = vld [vmem:[%s2] sm:$0xff]
    %v35 = vsub.f32 %v32, %v33
    %v36 = vadd.f32 %v35, 1e-06
    %v37 = vmul.f32 %v36, %v36
    %vm38 = vcmask 261120
    %v39 = vsel %vm38, %v37, 0.0
    %40 = vadd.xlane.f32.xlu0 %v39
    %v41 = vpop.xlane.xlu0 %40
    %v42 = vrsqrt.pop %v41
    %v43 = vmul.f32 %v42, %v41
    %v44 = vmul.f32 %v43, %v42
    %v45 = vmul.f32 0.5, %v44
    %v46 = vsub.f32 1.5, %v45
    %v47 = vmul.f32 %v42, %v46
    %v48 = vmul.f32 %v41, %v47
    %vm49 = vcmp.eq.f32.partialorder %v41, inf
    %v50 = vsel %vm49, %v41, %v48
    %vm51 = vcmp.eq.f32.partialorder %v41, 0.0
    %v52 = vand.u32 %v41, 2147483648
    %v53 = vsel %vm51, %v52, %v50
    %v54 = vsub.f32 1.0, %v53
    %v55 = vmax.f32 %v54, 0.0
    %v56 = vsub.f32 1.0, %v34
    %v57 = vmul.f32 %v56, %v41
    %v58 = vmul.f32 %v55, %v55
    %v59 = vmul.f32 %v34, %v58
    %v60 = vadd.f32 %v57, %v59
    %vm61 = vcmp.gt.f32.partialorder %v53, 0.6
    %v62 = vsel %vm61, 1, 0
    %v63 = vcvt.s32.f32 %v62
    %vm64 = vcmp.eq.f32.partialorder %v63, %v34
    %v65 = vsel %vm64, 1, 0
    %v66 = vcvt.s32.f32 %v65
    %vm67 = vcmask 7168
    %v68 = vsel %vm67, %v60, 0.0
    %v69 = vrot.slane %v68, 4
    %v70 = vadd.f32 %v68, %v69
    %v71 = vrot.slane %v70, 2
    %v72 = vadd.f32 %v70, %v71
    %v73 = vrot.slane %v72, 1
    %v74 = vadd.f32 %v72, %v73
    %v75 = vsel %vm67, %v66, 0.0
    %v76 = vrot.slane %v75, 4
    %v77 = vadd.f32 %v75, %v76
    %v78 = vrot.slane %v77, 2
    %v79 = vadd.f32 %v77, %v78
    %v80 = vrot.slane %v79, 1
    %v81 = vadd.f32 %v79, %v80
    %vm82 = vcmask 0
    %83 = vst.msk [vmem:[#allocation5] sm:$0x1] %vm82, %v74
    %84 = vst.msk [vmem:[#allocation6] sm:$0x1] %vm82, %v81
    // Predicated region
    $region18: #{tpu_custom_call.1} parent=1 // pred_check
      _
    $region19: #{tpu_custom_call.1} parent=1 // pred_check_branch
      %86 = sbr.rel (0) target = $region21
    $region20: #{tpu_custom_call.1} parent=1 // pred_region
      %88 = vsyncadd [#allocation4], 0
      %s90 = sshll.u32 [#allocation5], 4
      %s91 = int_to_ptr.vmem [resolvable:$true] %s90
      %s92 = sshll.u32 %s3, 4
      %s93 = int_to_ptr.hbm [resolvable:$true] %s92
      %95 = dma.vmem_to_hbm [thread:$0]  %s91, 16, %s93, [#allocation4]
    $region21: #{tpu_custom_call.1} parent=1 // pred_fallthru
      _
    // Predicated region
    $region22: #{tpu_custom_call.1} parent=1 // pred_check
      _
    $region23: #{tpu_custom_call.1} parent=1 // pred_check_branch
      %97 = sbr.rel (0) target = $region25
    $region24: #{tpu_custom_call.1} parent=1 // pred_region
      %99 = vsyncadd [#allocation7], 0
      %s101 = sshll.u32 [#allocation6], 4
      %s102 = int_to_ptr.vmem [resolvable:$true] %s101
      %s103 = sshll.u32 %s4, 4
      %s104 = int_to_ptr.hbm [resolvable:$true] %s103
      %106 = dma.vmem_to_hbm [thread:$0]  %s102, 16, %s104, [#allocation7]
    $region25: #{tpu_custom_call.1} parent=1 // pred_fallthru
      _
    // Predicated region
    $region26: #{tpu_custom_call.1} parent=1 // pred_check
      _
    $region27: #{tpu_custom_call.1} parent=1 // pred_check_branch
      %108 = sbr.rel (0) target = $region29
    $region28: #{tpu_custom_call.1} parent=1 // pred_region
      %110 = dma.done [#allocation4], 16
    $region29: #{tpu_custom_call.1} parent=1 // pred_fallthru
      _
    // Predicated region
    $region30: #{tpu_custom_call.1} parent=1 // pred_check
      _
    $region31: #{tpu_custom_call.1} parent=1 // pred_check_branch
      %112 = sbr.rel (0) target = $region33
    $region32: #{tpu_custom_call.1} parent=1 // pred_region
      %114 = dma.done [#allocation7], 16
    $region33: #{tpu_custom_call.1} parent=1 // pred_fallthru
      _
    %115 = vsyncpa [#allocation3], 1
    %116 = vsyncpa [#allocation4], 1
    %117 = vsyncpa [#allocation7], 1

</llo_original>
